<compile_context>
chip_gen: v5e
topology: v5e:2x2
jax: 0.10.0
libtpu: 0.0.40
codegen_flags: <defaults>
</compile_context>

<pallas_src>
import functools
import math

import jax
import jax.numpy as jnp
from jax.experimental import pallas as pl
from jax.experimental.pallas import tpu as pltpu

D_IN, D_H1, D_H2, D_OUT = 256, 128, 64, 32


def _round_up(x, m):
    return (x + m - 1) // m * m


def _mlp_kernel(x_ref, w1_ref, b1_ref, w2_ref, b2_ref, w3_ref, b3_ref, o_ref):
    # x arrives as f32 straight from HBM (no separate convert pass); cast to
    # bf16 in-register for the MXU.  Accumulation / bias-add / ReLU are f32.
    x = x_ref[...].astype(jnp.bfloat16)

    h1 = jnp.dot(x, w1_ref[...], preferred_element_type=jnp.float32) + b1_ref[...]
    h1 = jnp.maximum(h1, 0.0)

    h2 = (
        jnp.dot(h1.astype(jnp.bfloat16), w2_ref[...], preferred_element_type=jnp.float32)
        + b2_ref[...]
    )
    h2 = jnp.maximum(h2, 0.0)

    y = (
        jnp.dot(h2.astype(jnp.bfloat16), w3_ref[...], preferred_element_type=jnp.float32)
        + b3_ref[...]
    )
    o_ref[...] = y.astype(o_ref.dtype)


@functools.partial(jax.jit, static_argnames=("block_b",))
def projection_forward(res, params, block_b=2048):
    """res: (B, 256) float32 -> (B, 32) float32."""
    w1, b1, w2, b2, w3, b3 = params
    B = res.shape[0]
    assert res.shape[1] == D_IN

    # Batch tile: multiple of 256 (MXU-aligned M), capped by block_b.
    bb = min(block_b, _round_up(B, 256))
    # v7x has 2 TensorCores; make sure the "parallel" batch axis has >=2 grid
    # steps to shard when the batch is big enough to be worth splitting.
    if B > 256 and pl.cdiv(B, bb) < 2:
        bb = _round_up(pl.cdiv(B, 2), 256)
    # If the rounded-up tile exceeds the actual batch, use the exact batch as a
    # single block (block dims equal to the full array dims are always legal).
    if bb > B:
        bb = B
    num_blocks = pl.cdiv(B, bb)

    # Weights to bf16 (tiny: ~43K params); biases stay f32.
    w1b = w1.astype(jnp.bfloat16)
    w2b = w2.astype(jnp.bfloat16)
    w3b = w3.astype(jnp.bfloat16)

    def resident(shape):
        # Constant index_map: DMA'd once, VMEM-resident for the whole grid.
        return pl.BlockSpec(shape, lambda i: (0,) * len(shape))

    rows = num_blocks * bb
    flops = 2 * rows * (D_IN * D_H1 + D_H1 * D_H2 + D_H2 * D_OUT)
    bytes_accessed = (
        rows * D_IN * 4                                       # f32 activations in
        + rows * D_OUT * 4                                    # f32 output
        + (D_IN * D_H1 + D_H1 * D_H2 + D_H2 * D_OUT) * 2      # bf16 weights
        + (D_H1 + D_H2 + D_OUT) * 4                           # f32 biases
    )

    out = pl.pallas_call(
        _mlp_kernel,
        out_shape=jax.ShapeDtypeStruct((B, D_OUT), jnp.float32),
        grid_spec=pltpu.PrefetchScalarGridSpec(
            num_scalar_prefetch=0,
            grid=(num_blocks,),
            in_specs=[
                pl.BlockSpec((bb, D_IN), lambda i: (i, 0)),  # x tile (f32)
                resident((D_IN, D_H1)),   # w1 (bf16)
                resident((1, D_H1)),      # b1 (f32)
                resident((D_H1, D_H2)),   # w2 (bf16)
                resident((1, D_H2)),      # b2 (f32)
                resident((D_H2, D_OUT)),  # w3 (bf16)
                resident((1, D_OUT)),     # b3 (f32)
            ],
            out_specs=pl.BlockSpec((bb, D_OUT), lambda i: (i, 0)),
        ),
        compiler_params=pltpu.CompilerParams(
            # Batch axis is independent -> shards across TensorCores on v7x.
            dimension_semantics=("parallel",),
        ),
        cost_estimate=pl.CostEstimate(
            flops=flops, transcendentals=0, bytes_accessed=bytes_accessed
        ),
    )(res, w1b, b1, w2b, b2, w3b, b3)
    return out


def init_params(key):
    """Deterministic init mimicking PyTorch's Linear default (U[-1/sqrt(fan_in), +])."""

    def linear(k, fan_in, fan_out):
        kw, kb = jax.random.split(k)
        bound = 1.0 / math.sqrt(fan_in)
        w = jax.random.uniform(kw, (fan_in, fan_out), jnp.float32, -bound, bound)
        b = jax.random.uniform(kb, (1, fan_out), jnp.float32, -bound, bound)
        return w, b

    k1, k2, k3 = jax.random.split(key, 3)
    w1, b1 = linear(k1, D_IN, D_H1)
    w2, b2 = linear(k2, D_H1, D_H2)
    w3, b3 = linear(k3, D_H2, D_OUT)
    return (w1, b1, w2, b2, w3, b3)


def _reference_f32(res, params):
    w1, b1, w2, b2, w3, b3 = params
    h = jnp.maximum(res @ w1 + b1, 0.0)
    h = jnp.maximum(h @ w2 + b2, 0.0)
    return h @ w3 + b3


def _reference_mixed(res, params):
    """Mirrors the kernel's bf16-operand / f32-accumulate numerics."""
    w1, b1, w2, b2, w3, b3 = params
    bf, f32 = jnp.bfloat16, jnp.float32
    x = res.astype(bf).astype(f32)
    h = jnp.maximum(x @ w1.astype(bf).astype(f32) + b1, 0.0).astype(bf).astype(f32)
    h = jnp.maximum(h @ w2.astype(bf).astype(f32) + b2, 0.0).astype(bf).astype(f32)
    return h @ w3.astype(bf).astype(f32) + b3


if __name__ == "__main__":
    key = jax.random.PRNGKey(0)
    k_params, k_x1, k_x2 = jax.random.split(key, 3)
    params = init_params(k_params)

    # Case 1: tiny batch consistent with the module spec (batch=2, features=256).
    B1 = 2
    res1 = jax.random.normal(k_x1, (B1, D_IN), jnp.float32)
    out1 = jax.block_until_ready(projection_forward(res1, params))
    assert out1.shape == (B1, D_OUT), out1.shape
    err1_f32 = float(jnp.max(jnp.abs(out1 - _reference_f32(res1, params))))
    err1_mix = float(jnp.max(jnp.abs(out1 - _reference_mixed(res1, params))))
    assert err1_f32 < 5e-2, f"f32-reference mismatch: {err1_f32}"
    assert err1_mix < 2e-3, f"mixed-precision reference mismatch: {err1_mix}"

    # Case 2: ragged batch (not a multiple of the 256-row tile) -> exercises the
    # multi-block grid with a partial last block and the v7x 2-step split.
    B2 = 300
    res2 = jax.random.normal(k_x2, (B2, D_IN), jnp.float32)
    out2 = jax.block_until_ready(projection_forward(res2, params))
    assert out2.shape == (B2, D_OUT), out2.shape
    err2_f32 = float(jnp.max(jnp.abs(out2 - _reference_f32(res2, params))))
    err2_mix = float(jnp.max(jnp.abs(out2 - _reference_mixed(res2, params))))
    assert err2_f32 < 5e-2, f"ragged f32-reference mismatch: {err2_f32}"
    assert err2_mix < 2e-3, f"ragged mixed-precision mismatch: {err2_mix}"

    print("KERNEL_OK")
</pallas_src>

<mosaic_0001>
module attributes {stable_mosaic.version = 11 : i64} {
  func.func @_mlp_kernel(%arg0: i32, %arg1: memref<2x256xf32, #tpu.memory_space<vmem>>, %arg2: memref<256x128xbf16, #tpu.memory_space<vmem>>, %arg3: memref<1x128xf32, #tpu.memory_space<vmem>>, %arg4: memref<128x64xbf16, #tpu.memory_space<vmem>>, %arg5: memref<1x64xf32, #tpu.memory_space<vmem>>, %arg6: memref<64x32xbf16, #tpu.memory_space<vmem>>, %arg7: memref<1x32xf32, #tpu.memory_space<vmem>>, %arg8: memref<2x32xf32, #tpu.memory_space<vmem>>) attributes {dimension_semantics = [#tpu.dimension_semantics<parallel>], iteration_bounds = array<i64: 1>, scalar_prefetch = 0 : i64, scratch_operands = 0 : i64, tpu.core_type = #tpu.core_type<tc>, window_params = [{transform_indices = @transform_0, window_bounds = array<i64: 2, 256>}, {pipeline_mode = #tpu.pipeline_mode<synchronous>, transform_indices = @transform_1, window_bounds = array<i64: 256, 128>}, {pipeline_mode = #tpu.pipeline_mode<synchronous>, transform_indices = @transform_2, window_bounds = array<i64: 1, 128>}, {pipeline_mode = #tpu.pipeline_mode<synchronous>, transform_indices = @transform_3, window_bounds = array<i64: 128, 64>}, {pipeline_mode = #tpu.pipeline_mode<synchronous>, transform_indices = @transform_4, window_bounds = array<i64: 1, 64>}, {pipeline_mode = #tpu.pipeline_mode<synchronous>, transform_indices = @transform_5, window_bounds = array<i64: 64, 32>}, {pipeline_mode = #tpu.pipeline_mode<synchronous>, transform_indices = @transform_6, window_bounds = array<i64: 1, 32>}, {transform_indices = @transform_7, window_bounds = array<i64: 2, 32>}]} {
    %c0 = arith.constant 0 : index
    %c0_0 = arith.constant 0 : index
    %0 = vector.load %arg1[%c0, %c0_0] : memref<2x256xf32, #tpu.memory_space<vmem>>, vector<2x256xf32>
    %1 = arith.truncf %0 : vector<2x256xf32> to vector<2x256xbf16>
    %c0_1 = arith.constant 0 : index
    %c0_2 = arith.constant 0 : index
    %2 = vector.load %arg2[%c0_1, %c0_2] : memref<256x128xbf16, #tpu.memory_space<vmem>>, vector<256x128xbf16>
    %cst = arith.constant dense<0.000000e+00> : vector<2x128xf32>
    %3 = tpu.matmul %1, %2, %cst {dimension_numbers = #tpu.dot_dimension_numbers<[1], [0], [0], [1], [0, 0, 1, 1], [], []>} : vector<2x256xbf16>, vector<256x128xbf16>, vector<2x128xf32> -> vector<2x128xf32>
    %c0_3 = arith.constant 0 : index
    %c0_4 = arith.constant 0 : index
    %4 = vector.load %arg3[%c0_3, %c0_4] : memref<1x128xf32, #tpu.memory_space<vmem>>, vector<1x128xf32>
    %5 = vector.broadcast %4 : vector<1x128xf32> to vector<2x128xf32>
    %6 = arith.addf %3, %5 : vector<2x128xf32>
    %cst_5 = arith.constant 0.000000e+00 : f32
    %7 = vector.broadcast %cst_5 : f32 to vector<2x128xf32>
    %8 = arith.maximumf %6, %7 : vector<2x128xf32>
    %9 = arith.truncf %8 : vector<2x128xf32> to vector<2x128xbf16>
    %c0_6 = arith.constant 0 : index
    %c0_7 = arith.constant 0 : index
    %10 = vector.load %arg4[%c0_6, %c0_7] : memref<128x64xbf16, #tpu.memory_space<vmem>>, vector<128x64xbf16>
    %cst_8 = arith.constant dense<0.000000e+00> : vector<2x64xf32>
    %11 = tpu.matmul %9, %10, %cst_8 {dimension_numbers = #tpu.dot_dimension_numbers<[1], [0], [0], [1], [0, 0, 1, 1], [], []>} : vector<2x128xbf16>, vector<128x64xbf16>, vector<2x64xf32> -> vector<2x64xf32>
    %c0_9 = arith.constant 0 : index
    %c0_10 = arith.constant 0 : index
    %12 = vector.load %arg5[%c0_9, %c0_10] : memref<1x64xf32, #tpu.memory_space<vmem>>, vector<1x64xf32>
    %13 = vector.broadcast %12 : vector<1x64xf32> to vector<2x64xf32>
    %14 = arith.addf %11, %13 : vector<2x64xf32>
    %cst_11 = arith.constant 0.000000e+00 : f32
    %15 = vector.broadcast %cst_11 : f32 to vector<2x64xf32>
    %16 = arith.maximumf %14, %15 : vector<2x64xf32>
    %17 = arith.truncf %16 : vector<2x64xf32> to vector<2x64xbf16>
    %c0_12 = arith.constant 0 : index
    %c0_13 = arith.constant 0 : index
    %18 = vector.load %arg6[%c0_12, %c0_13] : memref<64x32xbf16, #tpu.memory_space<vmem>>, vector<64x32xbf16>
    %cst_14 = arith.constant dense<0.000000e+00> : vector<2x32xf32>
    %19 = tpu.matmul %17, %18, %cst_14 {dimension_numbers = #tpu.dot_dimension_numbers<[1], [0], [0], [1], [0, 0, 1, 1], [], []>} : vector<2x64xbf16>, vector<64x32xbf16>, vector<2x32xf32> -> vector<2x32xf32>
    %c0_15 = arith.constant 0 : index
    %c0_16 = arith.constant 0 : index
    %20 = vector.load %arg7[%c0_15, %c0_16] : memref<1x32xf32, #tpu.memory_space<vmem>>, vector<1x32xf32>
    %21 = vector.broadcast %20 : vector<1x32xf32> to vector<2x32xf32>
    %22 = arith.addf %19, %21 : vector<2x32xf32>
    %c0_17 = arith.constant 0 : index
    %c0_18 = arith.constant 0 : index
    %23 = vector.load %arg8[%c0_17, %c0_18] : memref<2x32xf32, #tpu.memory_space<vmem>>, vector<2x32xf32>
    tpu.vector_store %arg8[%c0_17, %c0_18], %22 {strides = array<i32>} : memref<2x32xf32, #tpu.memory_space<vmem>>, vector<2x32xf32>,
    return
  }
  func.func @transform_0(%arg0: i32) -> (i32, i32) {
    %c0_i32 = arith.constant 0 : i32
    %c0_i32_0 = arith.constant 0 : i32
    return %arg0, %c0_i32 : i32, i32
  }
  func.func @transform_1(%arg0: i32) -> (i32, i32) {
    %c0_i32 = arith.constant 0 : i32
    %c0_i32_0 = arith.constant 0 : i32
    %c0_i32_1 = arith.constant 0 : i32
    return %c0_i32, %c0_i32_0 : i32, i32
  }
  func.func @transform_2(%arg0: i32) -> (i32, i32) {
    %c0_i32 = arith.constant 0 : i32
    %c0_i32_0 = arith.constant 0 : i32
    %c0_i32_1 = arith.constant 0 : i32
    return %c0_i32, %c0_i32_0 : i32, i32
  }
  func.func @transform_3(%arg0: i32) -> (i32, i32) {
    %c0_i32 = arith.constant 0 : i32
    %c0_i32_0 = arith.constant 0 : i32
    %c0_i32_1 = arith.constant 0 : i32
    return %c0_i32, %c0_i32_0 : i32, i32
  }
  func.func @transform_4(%arg0: i32) -> (i32, i32) {
    %c0_i32 = arith.constant 0 : i32
    %c0_i32_0 = arith.constant 0 : i32
    %c0_i32_1 = arith.constant 0 : i32
    return %c0_i32, %c0_i32_0 : i32, i32
  }
  func.func @transform_5(%arg0: i32) -> (i32, i32) {
    %c0_i32 = arith.constant 0 : i32
    %c0_i32_0 = arith.constant 0 : i32
    %c0_i32_1 = arith.constant 0 : i32
    return %c0_i32, %c0_i32_0 : i32, i32
  }
  func.func @transform_6(%arg0: i32) -> (i32, i32) {
    %c0_i32 = arith.constant 0 : i32
    %c0_i32_0 = arith.constant 0 : i32
    %c0_i32_1 = arith.constant 0 : i32
    return %c0_i32, %c0_i32_0 : i32, i32
  }
  func.func @transform_7(%arg0: i32) -> (i32, i32) {
    %c0_i32 = arith.constant 0 : i32
    %c0_i32_0 = arith.constant 0 : i32
    return %arg0, %c0_i32 : i32, i32
  }
}

</mosaic_0001>

<llo_original>
// kernel: projection_forward.1
$region0: #{projection_forward.1}
  #allocation0 [shape = 'u32[]', space=smem, size = 0x4, offset = 0x4, fixed_abs, tag = 'smem constant byte address 0x4 - core index']
  #allocation1 [shape = 'u32[72,128]{1,0:T(1,128)}', space=vmem, size = 0x9000, scoped, tag = 'internal scratch']
  %s0 = inlined_call_operand.vmem [shape: f32[2,256], index: 0, kind: input, shape index: {}]
  %s1 = inlined_call_operand.vmem [shape: bf16[256,128], index: 1, kind: input, shape index: {}]
  %s2 = inlined_call_operand.vmem [shape: f32[1,128], index: 2, kind: input, shape index: {}]
  %s3 = inlined_call_operand.vmem [shape: bf16[128,64], index: 3, kind: input, shape index: {}]
  %s4 = inlined_call_operand.vmem [shape: f32[1,64], index: 4, kind: input, shape index: {}]
  %s5 = inlined_call_operand.vmem [shape: bf16[64,32], index: 5, kind: input, shape index: {}]
  %s6 = inlined_call_operand.vmem [shape: f32[1,32], index: 6, kind: input, shape index: {}]
  %s7 = inlined_call_operand.hbm [shape: f32[2,32], index: 7, kind: output, shape index: {}]
  %s8 = sld [smem:[#allocation0]]
  $region38: #{projection_forward.1} parent=0
    _
  %s10 = ssub.s32 1, %s8
  %s11 = scalar_select 0, %s10, %s8
  $region1: #{projection_forward.1} parent=0
    #allocation2 [shape = 'u8[1024]{0}', space=vmem, size = 0x400, scoped, tag = 'output window, operand 0, single buffered']
    #allocation3 [shape = 's32[1]{0}', space=sflag, size = 0x4, scoped, tag = 'scoped memory for projection_forward.1']
    %12 = vsyncpa [#allocation3], 0
    // Predicated region
    $region2: #{projection_forward.1} parent=1 // pred_check
      _
    $region3: #{projection_forward.1} parent=1 // pred_check_branch
      %14 = sbr.rel (0) target = $region5
    $region4: #{projection_forward.1} parent=1 // pred_region
      _
    $region5: #{projection_forward.1} parent=1 // pred_fallthru
      _
    // Predicated region
    $region6: #{projection_forward.1} parent=1 // pred_check
      _
    $region7: #{projection_forward.1} parent=1 // pred_check_branch
      %16 = sbr.rel (0) target = $region9
    $region8: #{projection_forward.1} parent=1 // pred_region
      _
    $region9: #{projection_forward.1} parent=1 // pred_fallthru
      _
    // Predicated region
    $region10: #{projection_forward.1} parent=1 // pred_check
      _
    $region11: #{projection_forward.1} parent=1 // pred_check_branch
      %18 = sbr.rel (0) target = $region13
    $region12: #{projection_forward.1} parent=1 // pred_region
      _
    $region13: #{projection_forward.1} parent=1 // pred_fallthru
      _
    // Predicated region
    $region14: #{projection_forward.1} parent=1 // pred_check
      _
    $region15: #{projection_forward.1} parent=1 // pred_check_branch
      %20 = sbr.rel (0) target = $region17
    $region16: #{projection_forward.1} parent=1 // pred_region
      _
    $region17: #{projection_forward.1} parent=1 // pred_fallthru
      _
    // Predicated region
    $region18: #{projection_forward.1} parent=1 // pred_check
      _
    $region19: #{projection_forward.1} parent=1 // pred_check_branch
      %22 = sbr.rel (0) target = $region21
    $region20: #{projection_forward.1} parent=1 // pred_region
      _
    $region21: #{projection_forward.1} parent=1 // pred_fallthru
      _
    // Predicated region
    $region22: #{projection_forward.1} parent=1 // pred_check
      _
    $region23: #{projection_forward.1} parent=1 // pred_check_branch
      %24 = sbr.rel (0) target = $region25
    $region24: #{projection_forward.1} parent=1 // pred_region
      _
    $region25: #{projection_forward.1} parent=1 // pred_fallthru
      _
    // Predicated region
    $region26: #{projection_forward.1} parent=1 // pred_check
      _
    $region27: #{projection_forward.1} parent=1 // pred_check_branch
      %26 = sbr.rel (0) target = $region29
    $region28: #{projection_forward.1} parent=1 // pred_region
      _
    $region29: #{projection_forward.1} parent=1 // pred_fallthru
      _
    %v28 = vld [vmem:[%s0] sm:$0xf]
    %30 = vst [vmem:[#allocation1] ss:$4 sm:$0xff] %v28
    %v31 = vld.sshfl [vmem:[#allocation1] sm:$0xff pattern:$0x73625140]
    %v32 = vld.sshfl [vmem:[#allocation1 + $0x8] sm:$0xff pattern:$0x73625140]
    %v35 = vpack.c.bf16 %v31, %v31
    %v36 = vpack.c.bf16 %v32, %v32
    %v37 = vld [vmem:[%s1] sm:$0xf]
    %v38 = vld [vmem:[%s1 + $0x4] sm:$0xf]
    %v39 = vld [vmem:[%s1 + $0x8] sm:$0xf]
    %v40 = vld [vmem:[%s1 + $0xc] sm:$0xf]
    %v41 = vld [vmem:[%s1 + $0x10] sm:$0xf]
    %v42 = vld [vmem:[%s1 + $0x14] sm:$0xf]
    %v43 = vld [vmem:[%s1 + $0x18] sm:$0xf]
    %v44 = vld [vmem:[%s1 + $0x1c] sm:$0xf]
    %v45 = vld [vmem:[%s1 + $0x20] sm:$0xf]
    %v46 = vld [vmem:[%s1 + $0x24] sm:$0xf]
    %v47 = vld [vmem:[%s1 + $0x28] sm:$0xf]
    %v48 = vld [vmem:[%s1 + $0x2c] sm:$0xf]
    %v49 = vld [vmem:[%s1 + $0x30] sm:$0xf]
    %v50 = vld [vmem:[%s1 + $0x34] sm:$0xf]
    %v51 = vld [vmem:[%s1 + $0x38] sm:$0xf]
    %v52 = vld [vmem:[%s1 + $0x3c] sm:$0xf]
    %v53 = vld [vmem:[%s1 + $0x40] sm:$0xf]
    %v54 = vld [vmem:[%s1 + $0x44] sm:$0xf]
    %v55 = vld [vmem:[%s1 + $0x48] sm:$0xf]
    %v56 = vld [vmem:[%s1 + $0x4c] sm:$0xf]
    %v57 = vld [vmem:[%s1 + $0x50] sm:$0xf]
    %v58 = vld [vmem:[%s1 + $0x54] sm:$0xf]
    %v59 = vld [vmem:[%s1 + $0x58] sm:$0xf]
    %v60 = vld [vmem:[%s1 + $0x5c] sm:$0xf]
    %v61 = vld [vmem:[%s1 + $0x60] sm:$0xf]
    %v62 = vld [vmem:[%s1 + $0x64] sm:$0xf]
    %v63 = vld [vmem:[%s1 + $0x68] sm:$0xf]
    %v64 = vld [vmem:[%s1 + $0x6c] sm:$0xf]
    %v65 = vld [vmem:[%s1 + $0x70] sm:$0xf]
    %v66 = vld [vmem:[%s1 + $0x74] sm:$0xf]
    %v67 = vld [vmem:[%s1 + $0x78] sm:$0xf]
    %v68 = vld [vmem:[%s1 + $0x7c] sm:$0xf]
    %v69 = vld [vmem:[%s2] sm:$0x1]
    %v71 = vperm.slane %v69, 0
    %v105 = vunpack.c.l.b16 %v37
    %v106 = vunpack.c.l.b16 %v38
    %v107 = vunpack.c.l.b16 %v39
    %v108 = vunpack.c.l.b16 %v40
    %v109 = vunpack.c.l.b16 %v41
    %v110 = vunpack.c.l.b16 %v42
    %v111 = vunpack.c.l.b16 %v43
    %v112 = vunpack.c.l.b16 %v44
    %v113 = vunpack.c.l.b16 %v45
    %v114 = vunpack.c.l.b16 %v46
    %v115 = vunpack.c.l.b16 %v47
    %v116 = vunpack.c.l.b16 %v48
    %v117 = vunpack.c.l.b16 %v49
    %v118 = vunpack.c.l.b16 %v50
    %v119 = vunpack.c.l.b16 %v51
    %v120 = vunpack.c.l.b16 %v52
    %v121 = vunpack.c.l.b16 %v53
    %v122 = vunpack.c.l.b16 %v54
    %v123 = vunpack.c.l.b16 %v55
    %v124 = vunpack.c.l.b16 %v56
    %v125 = vunpack.c.l.b16 %v57
    %v126 = vunpack.c.l.b16 %v58
    %v127 = vunpack.c.l.b16 %v59
    %v128 = vunpack.c.l.b16 %v60
    %v129 = vunpack.c.l.b16 %v61
    %v130 = vunpack.c.l.b16 %v62
    %v131 = vunpack.c.l.b16 %v63
    %v132 = vunpack.c.l.b16 %v64
    %v133 = vunpack.c.l.b16 %v65
    %v134 = vunpack.c.l.b16 %v66
    %v135 = vunpack.c.l.b16 %v67
    %v136 = vunpack.c.l.b16 %v68
    %v137 = vpack.c.b16 %v106, %v105
    %v138 = vpack.c.b16 %v108, %v107
    %v139 = vpack.c.b16 %v110, %v109
    %v140 = vpack.c.b16 %v112, %v111
    %v141 = vpack.c.b16 %v114, %v113
    %v142 = vpack.c.b16 %v116, %v115
    %v143 = vpack.c.b16 %v118, %v117
    %v144 = vpack.c.b16 %v120, %v119
    %v145 = vpack.c.b16 %v122, %v121
    %v146 = vpack.c.b16 %v124, %v123
    %v147 = vpack.c.b16 %v126, %v125
    %v148 = vpack.c.b16 %v128, %v127
    %v149 = vpack.c.b16 %v130, %v129
    %v150 = vpack.c.b16 %v132, %v131
    %v151 = vpack.c.b16 %v134, %v133
    %v152 = vpack.c.b16 %v136, %v135
    %169 = vmatpush.bf16.msra.mxu0 %v144
    %170 = vmatpush.bf16.msra.mxu0 %v143
    %171 = vmatpush.bf16.msra.mxu0 %v142
    %172 = vmatpush.bf16.msra.mxu0 %v141
    %173 = vmatpush.bf16.msra.mxu0 %v140
    %174 = vmatpush.bf16.msra.mxu0 %v139
    %175 = vmatpush.bf16.msra.mxu0 %v138
    %176 = vmatpush.bf16.msra.mxu0 %v137
    %177 = vmatmul.bf16.gmra.mxu0 %v35
    %v178 = vpop.f32.mrf.mxu0
    %v179 = vadd.f32 %v71, %v178
    %v180 = vpop.f32.mrf.mxu0
    %181 = vdwg.mxu0
    %182 = vmatpush.bf16.msra.mxu0 %v152
    %183 = vmatpush.bf16.msra.mxu0 %v151
    %184 = vmatpush.bf16.msra.mxu0 %v150
    %185 = vmatpush.bf16.msra.mxu0 %v149
    %186 = vmatpush.bf16.msra.mxu0 %v148
    %187 = vmatpush.bf16.msra.mxu0 %v147
    %188 = vmatpush.bf16.msra.mxu0 %v146
    %189 = vmatpush.bf16.msra.mxu0 %v145
    %190 = vmatmul.bf16.gmra.mxu0 %v36
    %v191 = vpop.f32.mrf.mxu0
    %v192 = vadd.f32 %v179, %v191
    %v193 = vpop.f32.mrf.mxu0
    %194 = vdwg.mxu0
    %v195 = vmax.f32 %v192, 0.0
    %v196 = vpack.c.bf16 %v195, %v195
    %v197 = vld [vmem:[%s3] sm:$0xf]
    %v198 = vld [vmem:[%s3 + $0x4] sm:$0xf]
    %v199 = vld [vmem:[%s3 + $0x8] sm:$0xf]
    %v200 = vld [vmem:[%s3 + $0xc] sm:$0xf]
    %v201 = vld [vmem:[%s3 + $0x10] sm:$0xf]
    %v202 = vld [vmem:[%s3 + $0x14] sm:$0xf]
    %v203 = vld [vmem:[%s3 + $0x18] sm:$0xf]
    %v204 = vld [vmem:[%s3 + $0x1c] sm:$0xf]
    %v205 = vld [vmem:[%s3 + $0x20] sm:$0xf]
    %v206 = vld [vmem:[%s3 + $0x24] sm:$0xf]
    %v207 = vld [vmem:[%s3 + $0x28] sm:$0xf]
    %v208 = vld [vmem:[%s3 + $0x2c] sm:$0xf]
    %v209 = vld [vmem:[%s3 + $0x30] sm:$0xf]
    %v210 = vld [vmem:[%s3 + $0x34] sm:$0xf]
    %v211 = vld [vmem:[%s3 + $0x38] sm:$0xf]
    %v212 = vld [vmem:[%s3 + $0x3c] sm:$0xf]
    %v213 = vld [vmem:[%s4] sm:$0x1]
    %v215 = vperm.slane %v213, 0
    %v233 = vunpack.c.l.b16 %v197
    %v234 = vunpack.c.l.b16 %v198
    %v235 = vunpack.c.l.b16 %v199
    %v236 = vunpack.c.l.b16 %v200
    %v237 = vunpack.c.l.b16 %v201
    %v238 = vunpack.c.l.b16 %v202
    %v239 = vunpack.c.l.b16 %v203
    %v240 = vunpack.c.l.b16 %v204
    %v241 = vunpack.c.l.b16 %v205
    %v242 = vunpack.c.l.b16 %v206
    %v243 = vunpack.c.l.b16 %v207
    %v244 = vunpack.c.l.b16 %v208
    %v245 = vunpack.c.l.b16 %v209
    %v246 = vunpack.c.l.b16 %v210
    %v247 = vunpack.c.l.b16 %v211
    %v248 = vunpack.c.l.b16 %v212
    %v249 = vpack.c.b16 %v234, %v233
    %v250 = vpack.c.b16 %v236, %v235
    %v251 = vpack.c.b16 %v238, %v237
    %v252 = vpack.c.b16 %v240, %v239
    %v253 = vpack.c.b16 %v242, %v241
    %v254 = vpack.c.b16 %v244, %v243
    %v255 = vpack.c.b16 %v246, %v245
    %v256 = vpack.c.b16 %v248, %v247
    %265 = vmatpush.bf16.msra.mxu0 %v256
    %266 = vmatpush.bf16.msra.mxu0 %v255
    %267 = vmatpush.bf16.msra.mxu0 %v254
    %268 = vmatpush.bf16.msra.mxu0 %v253
    %269 = vmatpush.bf16.msra.mxu0 %v252
    %270 = vmatpush.bf16.msra.mxu0 %v251
    %271 = vmatpush.bf16.msra.mxu0 %v250
    %272 = vmatpush.bf16.msra.mxu0 %v249
    %273 = vmatmul.bf16.gmra.mxu0 %v196
    %v274 = vpop.f32.mrf.mxu0
    %v275 = vadd.f32 %v215, %v274
    %v276 = vpop.f32.mrf.mxu0
    %277 = vdwg.mxu0
    %v278 = vmax.f32 %v275, 0.0
    %v279 = vpack.c.bf16 %v278, %v278
    %v280 = vld [vmem:[%s5] sm:$0xf]
    %v281 = vld [vmem:[%s5 + $0x4] sm:$0xf]
    %v282 = vld [vmem:[%s5 + $0x8] sm:$0xf]
    %v283 = vld [vmem:[%s5 + $0xc] sm:$0xf]
    %v284 = vld [vmem:[%s5 + $0x10] sm:$0xf]
    %v285 = vld [vmem:[%s5 + $0x14] sm:$0xf]
    %v286 = vld [vmem:[%s5 + $0x18] sm:$0xf]
    %v287 = vld [vmem:[%s5 + $0x1c] sm:$0xf]
    %v288 = vld [vmem:[%s6] sm:$0x1]
    %v290 = vperm.slane %v288, 0
    %v300 = vunpack.c.l.b16 %v280
    %v301 = vunpack.c.l.b16 %v281
    %v302 = vunpack.c.l.b16 %v282
    %v303 = vunpack.c.l.b16 %v283
    %v304 = vunpack.c.l.b16 %v284
    %v305 = vunpack.c.l.b16 %v285
    %v306 = vunpack.c.l.b16 %v286
    %v307 = vunpack.c.l.b16 %v287
    %v308 = vpack.c.b16 %v301, %v300
    %v309 = vpack.c.b16 %v303, %v302
    %v310 = vpack.c.b16 %v305, %v304
    %v311 = vpack.c.b16 %v307, %v306
    %vm316 = vcmask 523264
    %v318 = vsel %vm316, %v279, 0
    %320 = vmatpush.bf16.msra.mxu0 0
    %321 = vmatpush.bf16.msra.mxu0 0
    %322 = vmatpush.bf16.msra.mxu0 0
    %323 = vmatpush.bf16.msra.mxu0 0
    %324 = vmatpush.bf16.msra.mxu0 %v311
    %325 = vmatpush.bf16.msra.mxu0 %v310
    %326 = vmatpush.bf16.msra.mxu0 %v309
    %327 = vmatpush.bf16.msra.mxu0 %v308
    %328 = vmatmul.bf16.gmra.mxu0 %v318
    %v329 = vpop.f32.mrf.mxu0
    %v330 = vadd.f32 %v290, %v329
    %v331 = vpop.f32.mrf.mxu0
    %332 = vdwg.mxu0
    %vm333 = vcmask 254976
    %334 = vst.msk [vmem:[#allocation2] sm:$0x3] %vm333, %v330
    // Predicated region
    $region30: #{projection_forward.1} parent=1 // pred_check
      _
    $region31: #{projection_forward.1} parent=1 // pred_check_branch
      %336 = sbr.rel (0) target = $region33
    $region32: #{projection_forward.1} parent=1 // pred_region
      %338 = vsyncadd [#allocation3], 0
      %s340 = sshll.u32 [#allocation2], 4
      %s341 = int_to_ptr.vmem [resolvable:$true] %s340
      %s342 = sshll.u32 %s7, 4
      %s343 = int_to_ptr.hbm [resolvable:$true] %s342
      %345 = dma.vmem_to_hbm [thread:$0]  %s341, 32, %s343, [#allocation3]
    $region33: #{projection_forward.1} parent=1 // pred_fallthru
      _
    // Predicated region
    $region34: #{projection_forward.1} parent=1 // pred_check
      _
    $region35: #{projection_forward.1} parent=1 // pred_check_branch
      %347 = sbr.rel (0) target = $region37
    $region36: #{projection_forward.1} parent=1 // pred_region
      %349 = dma.done [#allocation3], 32
    $region37: #{projection_forward.1} parent=1 // pred_fallthru
      _
    %350 = vsyncpa [#allocation3], 1

</llo_original>
